<compile_context>
chip_gen: v5e
topology: v5e:2x2
jax: 0.10.0
libtpu: 0.0.40
codegen_flags: <defaults>
</compile_context>

<pallas_src>
import functools

import numpy as np
import jax
import jax.numpy as jnp
from jax import lax
from jax.experimental import pallas as pl
from jax.experimental.pallas import tpu as pltpu

EMBED_DIM = 768
VOCAB = 10000
IMG_SIZE = 224
PATCH = 16
VIS_IN_CH = 3
AUD_IN_CH = 128

TOKEN_TILE = 256   # tokens gathered per grid step
MAX_TM = 512       # max matmul row tile


def _cdiv(a, b):
    return (a + b - 1) // b


def _round_up(x, m):
    return ((x + m - 1) // m) * m


def _choose_tm(M, max_tm=MAX_TM):
    """Row-tile size for the matmul.

    tm only needs sublane (8) alignment (K and N stay lane aligned, Pallas
    masks the partial tail block).  Prefer >= 2 *balanced* grid steps when M is
    large enough: the 'parallel' axis then splits evenly across v7x's two
    TensorCores (vision M=392 -> 200/192 instead of 256/136), and wasted
    tail-row compute is minimal on single-core v5e/v6e.
    """
    grid = max(_cdiv(M, max_tm), 2 if M >= 256 else 1)
    if grid == 1:
        return M        # single block equal to the full dim (always legal)
    return min(_round_up(_cdiv(M, grid), 8), max_tm)


# ---------------------------------------------------------------------------
# Pallas kernels
# ---------------------------------------------------------------------------

def _matmul_bias_kernel(a_ref, b_ref, bias_ref, o_ref):
    # (tm, K) @ (K, N) on the MXU with f32 accumulation, + broadcast bias.
    acc = jnp.dot(a_ref[...], b_ref[...], preferred_element_type=jnp.float32)
    o_ref[...] = (acc + bias_ref[...]).astype(o_ref.dtype)


def matmul_bias(a, b, bias, *, bias_per_row=False, out_dtype=jnp.float32,
                max_tm=MAX_TM):
    """C = a @ b + bias. bf16 operands, f32 accumulation.

    bias_per_row=False : bias has shape (N,)  -> broadcast over rows.
    bias_per_row=True  : bias has shape (M,)  -> broadcast over columns.
    out_dtype          : output dtype (default f32 to preserve module
                         semantics; pass bf16 when the consumer tolerates it).
    """
    M, K = a.shape
    K2, N = b.shape
    assert K == K2
    tm = _choose_tm(M, max_tm)
    grid = _cdiv(M, tm)

    if bias_per_row:
        bias2d = bias.reshape(M, 1).astype(jnp.float32)
        bias_spec = pl.BlockSpec((tm, 1), lambda i: (i, 0))
    else:
        bias2d = bias.reshape(1, N).astype(jnp.float32)
        bias_spec = pl.BlockSpec((1, N), lambda i: (0, 0))

    # Double-buffered activation / weight / output blocks (+4 MiB slack).
    out_bytes = np.dtype(out_dtype).itemsize
    vmem_est = 2 * (tm * K * 2 + K * N * 2 + tm * N * out_bytes)
    vmem_limit = int(min(max(vmem_est + (4 << 20), 16 << 20), 32 << 20))

    return pl.pallas_call(
        _matmul_bias_kernel,
        out_shape=jax.ShapeDtypeStruct((M, N), out_dtype),
        grid_spec=pltpu.PrefetchScalarGridSpec(
            num_scalar_prefetch=0,
            grid=(grid,),
            in_specs=[
                pl.BlockSpec((tm, K), lambda i: (i, 0)),
                pl.BlockSpec((K, N), lambda i: (0, 0)),   # weight: constant block
                bias_spec,
            ],
            out_specs=pl.BlockSpec((tm, N), lambda i: (i, 0)),
        ),
        compiler_params=pltpu.CompilerParams(
            dimension_semantics=("parallel",),
            vmem_limit_bytes=vmem_limit),
    )(a.astype(jnp.bfloat16), b.astype(jnp.bfloat16), bias2d)


def _embed_gather_kernel(ids_ref, table_hbm, o_ref, sem, *, total_tokens):
    """Row-gather: table_hbm[ids[base+t]] -> o_ref[t] for the tile's tokens.

    Issue-all-then-wait: every row DMA of the tile is started against one
    shared DMA semaphore (maximum in-flight depth -> covers HBM random-read
    latency), then a separate loop drains the semaphore.  All SMEM id reads
    happen in the start loop, i.e. before any .wait().
    """
    tt = o_ref.shape[0]
    base = pl.program_id(0) * tt
    n = jnp.minimum(total_tokens - base, tt)   # valid tokens in this tile

    def start_body(t, carry):
        row = ids_ref[base + t]
        pltpu.make_async_copy(
            table_hbm.at[pl.ds(row, 1), :],
            o_ref.at[pl.ds(t, 1), :],
            sem).start()
        return carry

    lax.fori_loop(0, n, start_body, 0)

    def wait_body(t, carry):
        # All row copies share `sem` and have identical byte counts, so a
        # dummy descriptor of the same shape is enough to consume one signal.
        pltpu.make_async_copy(
            table_hbm.at[pl.ds(0, 1), :],
            o_ref.at[pl.ds(t, 1), :],
            sem).wait()
        return carry

    lax.fori_loop(0, n, wait_body, 0)


def embedding_lookup(ids_flat, table):
    T = ids_flat.shape[0]
    V, E = table.shape
    # 8-aligned token tile; partial final block is masked on writeback, so no
    # padding and no out[:T] tail copy.
    tt = min(TOKEN_TILE, (T // 8) * 8) if T >= 8 else T
    grid = _cdiv(T, tt)

    ids = jnp.clip(ids_flat.astype(jnp.int32), 0, V - 1)   # guard OOB DMAs

    return pl.pallas_call(
        functools.partial(_embed_gather_kernel, total_tokens=T),
        out_shape=jax.ShapeDtypeStruct((T, E), table.dtype),
        grid_spec=pltpu.PrefetchScalarGridSpec(
            num_scalar_prefetch=1,                      # token ids land in SMEM
            grid=(grid,),
            in_specs=[pl.BlockSpec(memory_space=pl.ANY)],   # table stays in HBM
            out_specs=pl.BlockSpec((tt, E), lambda i, ids: (i, 0)),
            scratch_shapes=[pltpu.SemaphoreType.DMA(())],
        ),
        compiler_params=pltpu.CompilerParams(
            # Each tile writes only its own output block -> megacore-shardable.
            dimension_semantics=("parallel",)),
    )(ids, table)


# ---------------------------------------------------------------------------
# Module wrappers (glue in plain JAX, hot path in Pallas)
# ---------------------------------------------------------------------------

def init_params(key):
    k1, k2, k3, k4, k5 = jax.random.split(key, 5)
    params = {
        # TextEmbedding.reset_parameters: N(0, embed_dim**-0.5), no padding_idx.
        # Kept f32 to preserve exact nn.Embedding gather semantics.
        "text_table": (jax.random.normal(k1, (VOCAB, EMBED_DIM), jnp.float32)
                       * EMBED_DIM ** (-0.5)),
        # VisionEmbedding.proj : Conv2d(3, 768, kernel=16, stride=16)
        "vision_w": jax.random.normal(
            k2, (EMBED_DIM, VIS_IN_CH, PATCH, PATCH), jnp.float32) * 0.02,
        "vision_b": jax.random.normal(k3, (EMBED_DIM,), jnp.float32) * 0.02,
        # AudioEmbedding.conv : Conv2d(128, 768, kernel=1)
        "audio_w": jax.random.normal(
            k4, (EMBED_DIM, AUD_IN_CH, 1, 1), jnp.float32) * 0.02,
        "audio_b": jax.random.normal(k5, (EMBED_DIM,), jnp.float32) * 0.02,
    }
    # Cache MXU-ready bf16 weight matrices once: avoids a full f32-read /
    # bf16-write pass (~3.4 MB HBM traffic) over the weights on every forward.
    params["vision_w_mat"] = params["vision_w"].reshape(
        EMBED_DIM, VIS_IN_CH * PATCH * PATCH).T.astype(jnp.bfloat16)
    params["audio_w_mat"] = params["audio_w"].reshape(
        EMBED_DIM, AUD_IN_CH).astype(jnp.bfloat16)
    return params


def text_embed_forward(params, ids):
    B, S = ids.shape
    out = embedding_lookup(ids.reshape(B * S), params["text_table"])
    return out.reshape(B, S, EMBED_DIM)


def vision_embed_forward(params, x):
    B, C, H, W = x.shape
    assert H == IMG_SIZE and W == IMG_SIZE, (
        f"Input image size ({H}*{W}) doesn't match model ({IMG_SIZE}*{IMG_SIZE}).")
    nh, nw = H // PATCH, W // PATCH
    # Patchify: (B, C, H, W) -> (B*nh*nw, C*P*P), (c, kh, kw) flattened order.
    # Cast to bf16 first so the reorder pass moves half the bytes.
    # TODO(synk): the patchify transpose is still a separate XLA pass; fusing it
    # into the pallas_call input (allow_input_fusion / an in-kernel patch
    # gather) would save ~1.2 MB of HBM round trip but is not taken here to
    # keep lowering robust across generations.
    xb = x.astype(jnp.bfloat16)
    patches = xb.reshape(B, C, nh, PATCH, nw, PATCH)
    patches = patches.transpose(0, 2, 4, 1, 3, 5).reshape(
        B * nh * nw, C * PATCH * PATCH)
    out = matmul_bias(patches, params["vision_w_mat"], params["vision_b"])
    # matches proj(x).flatten(2).transpose(1, 2)  (no mask/cls token configured)
    return out.reshape(B, nh * nw, EMBED_DIM)


def audio_embed_forward(params, x):
    # PyTorch Conv2d accepts the unbatched 3-D (C, H, W) input that the 'audio'
    # modality detection implies; kernel_size=1 => per-pixel channel matmul.
    # Compute (E, H*W) directly: weights as LHS, pixels as RHS, per-row bias —
    # no wrapper transpose, lane dim = H*W.
    C, H, W = x.shape
    pix = x.reshape(C, H * W)                        # (C, H*W)
    out = matmul_bias(params["audio_w_mat"], pix, params["audio_b"],
                      bias_per_row=True)
    return out.reshape(EMBED_DIM, H, W)


def detect_modality(x):
    if x.ndim == 2 and jnp.issubdtype(x.dtype, jnp.integer):
        return "text"
    elif x.ndim == 4:
        return "vision"
    elif x.ndim == 3:
        return "audio"
    elif x.ndim == 5:
        return "video"
    raise ValueError("Unable to detect input data modality")


def omnimorph_forward(params, input_data, modality_type=None, fusion_technique=None):
    if modality_type is None:
        modality_type = detect_modality(input_data)
    if modality_type == "text":
        return text_embed_forward(params, input_data)
    if modality_type == "vision":
        return vision_embed_forward(params, input_data)
    if modality_type == "audio":
        return audio_embed_forward(params, input_data)
    # TODO(synk): 'video' modality is detected but never instantiated in OMNI4;
    # fusion techniques are registered dynamically and none exist by default.
    raise ValueError(f"Embedding for modality type {modality_type} not instantiated")


# ---------------------------------------------------------------------------
# Main
# ---------------------------------------------------------------------------

if __name__ == "__main__":
    root = jax.random.PRNGKey(0)
    k_params, k_txt, k_vis, k_aud = jax.random.split(root, 4)
    params = init_params(k_params)

    text_ids = jax.random.randint(k_txt, (2, 8), 0, VOCAB, dtype=jnp.int32)
    vision_x = jax.random.normal(k_vis, (2, 3, IMG_SIZE, IMG_SIZE), jnp.float32)
    audio_x = jax.random.normal(k_aud, (AUD_IN_CH, 16, 16), jnp.float32)

    # Text (exact gather check).
    txt_out = jax.block_until_ready(omnimorph_forward(params, text_ids))
    txt_ref = jnp.take(params["text_table"], text_ids.reshape(-1), axis=0
                       ).reshape(2, 8, EMBED_DIM)
    np.testing.assert_array_equal(np.asarray(txt_out), np.asarray(txt_ref))

    # Vision (patch-embedding conv as bf16 MXU matmul, f32 accumulation).
    vis_out = jax.block_until_ready(omnimorph_forward(params, vision_x))
    assert vis_out.shape == (2, (IMG_SIZE // PATCH) ** 2, EMBED_DIM)
    vx = vision_x.astype(jnp.bfloat16).astype(jnp.float32)
    vw = params["vision_w"].astype(jnp.bfloat16).astype(jnp.float32)
    vis_ref = lax.conv_general_dilated(
        vx, vw, window_strides=(PATCH, PATCH),
        padding="VALID", dimension_numbers=("NCHW", "OIHW", "NCHW"),
        precision=lax.Precision.HIGHEST) + params["vision_b"][None, :, None, None]
    vis_ref = vis_ref.reshape(2, EMBED_DIM, -1).transpose(0, 2, 1)
    np.testing.assert_allclose(np.asarray(vis_out), np.asarray(vis_ref),
                               rtol=2e-2, atol=2e-2)

    # Audio (1x1 conv as channel matmul, transposed-output kernel).
    aud_out = jax.block_until_ready(omnimorph_forward(params, audio_x))
    assert aud_out.shape == (EMBED_DIM, 16, 16)
    aw = params["audio_w"][:, :, 0, 0].astype(jnp.bfloat16).astype(jnp.float32)
    ax = audio_x.astype(jnp.bfloat16).astype(jnp.float32)
    aud_ref = jnp.einsum("ec,chw->ehw", aw, ax,
                         precision=lax.Precision.HIGHEST
                         ) + params["audio_b"][:, None, None]
    np.testing.assert_allclose(np.asarray(aud_out), np.asarray(aud_ref),
                               rtol=2e-2, atol=2e-2)

    print("KERNEL_OK")
</pallas_src>

<mosaic_0001>
module attributes {stable_mosaic.version = 11 : i64} {
  func.func @_embed_gather_kernel(%arg0: i32, %arg1: memref<16xi32, #tpu.memory_space<smem>>, %arg2: memref<10000x768xf32, #tpu.memory_space<any>>, %arg3: memref<16x768xf32, #tpu.memory_space<vmem>>, %arg4: memref<!tpu.dma_semaphore, #tpu.memory_space<semaphore_mem>>) attributes {dimension_semantics = [#tpu.dimension_semantics<parallel>], iteration_bounds = array<i64: 1>, scalar_prefetch = 1 : i64, scratch_operands = 1 : i64, tpu.core_type = #tpu.core_type<tc>, window_params = [{}, {transform_indices = @transform_1, window_bounds = array<i64: 16, 768>}]} {
    %c16_i32 = arith.constant 16 : i32
    %0 = arith.muli %arg0, %c16_i32 : i32
    %c16_i32_0 = arith.constant 16 : i32
    %1 = arith.subi %c16_i32_0, %0 : i32
    %c16_i32_1 = arith.constant 16 : i32
    %2 = arith.minsi %1, %c16_i32_1 : i32
    %c0_i32 = arith.constant 0 : i32
    %c0_i32_2 = arith.constant 0 : i32
    %3 = arith.subi %2, %c0_i32_2 : i32
    %4 = arith.addi %c0_i32_2, %3 : i32
    %c1_i32 = arith.constant 1 : i32
    scf.for %arg5 = %c0_i32_2 to %4 step %c1_i32  : i32 {
      %7 = arith.addi %0, %arg5 : i32
      %8 = arith.index_cast %7 : i32 to index
      %9 = memref.load %arg1[%8] : memref<16xi32, #tpu.memory_space<smem>>
      %c0_i32_6 = arith.constant 0 : i32
      %10 = tpu.memref_slice %arg2[%9, %c0_i32_6] : memref<10000x768xf32, #tpu.memory_space<any>> -> memref<1x768xf32, #tpu.memory_space<any>>
      %c0_i32_7 = arith.constant 0 : i32
      %11 = tpu.memref_slice %arg3[%arg5, %c0_i32_7] : memref<16x768xf32, #tpu.memory_space<vmem>> -> memref<1x768xf32, #tpu.memory_space<vmem>>
      tpu.enqueue_dma source(%10 : memref<1x768xf32, #tpu.memory_space<any>>) target(%11 : memref<1x768xf32, #tpu.memory_space<vmem>>) target_semaphore(%arg4 : memref<!tpu.dma_semaphore, #tpu.memory_space<semaphore_mem>>)
    }
    %c0_i32_3 = arith.constant 0 : i32
    %c0_i32_4 = arith.constant 0 : i32
    %5 = arith.subi %2, %c0_i32_4 : i32
    %6 = arith.addi %c0_i32_4, %5 : i32
    %c1_i32_5 = arith.constant 1 : i32
    scf.for %arg5 = %c0_i32_4 to %6 step %c1_i32_5  : i32 {
      %c0_i32_6 = arith.constant 0 : i32
      %c0_i32_7 = arith.constant 0 : i32
      %7 = tpu.memref_slice %arg2[%c0_i32_6, %c0_i32_7] : memref<10000x768xf32, #tpu.memory_space<any>> -> memref<1x768xf32, #tpu.memory_space<any>>
      %c0_i32_8 = arith.constant 0 : i32
      %8 = tpu.memref_slice %arg3[%arg5, %c0_i32_8] : memref<16x768xf32, #tpu.memory_space<vmem>> -> memref<1x768xf32, #tpu.memory_space<vmem>>
      tpu.wait_dma2 semaphore(%arg4 : memref<!tpu.dma_semaphore, #tpu.memory_space<semaphore_mem>>) src(%7 : memref<1x768xf32, #tpu.memory_space<any>>) dst(%8 : memref<1x768xf32, #tpu.memory_space<vmem>>)
    }
    return
  }
  func.func @transform_1(%arg0: i32, %arg1: memref<16xi32, #tpu.memory_space<smem>>) -> (i32, i32) {
    %c0_i32 = arith.constant 0 : i32
    %c0_i32_0 = arith.constant 0 : i32
    return %arg0, %c0_i32 : i32, i32
  }
}

</mosaic_0001>

<llo_original>
// kernel: tpu_custom_call.1
$region0: #{tpu_custom_call.1}
  #allocation0 [shape = 'u32[]', space=smem, size = 0x4, offset = 0x4, fixed_abs, tag = 'smem constant byte address 0x4 - core index']
  #allocation1 [shape = 'u32[72,128]{1,0:T(1,128)}', space=vmem, size = 0x9000, scoped, tag = 'internal scratch']
  #allocation2 [shape = 's32[1]{0}', space=sflag, size = 0x4, scoped, tag = 'scratch operand']
  #allocation3 [shape = 's32[1]{0}', space=sflag, size = 0x4, scoped, tag = 'scoped memory for tpu_custom_call.1']
  #allocation4 [shape = 'u8[512]{0}', space=smem, size = 0x200, scoped, tag = 'prefetched SMEM operand 0']
  #allocation7 [shape = 's32[]', space=sflag, size = 0x4, offset = 0, fixed_abs, tag = 'sflag constant byte address 0x0 - dummy sync flag']
  %s0 = inlined_call_operand.hbm [shape: s32[16], index: 0, kind: input, shape index: {}]
  %s1 = inlined_call_operand.hbm [shape: f32[10000,768], index: 1, kind: input, shape index: {}]
  %s2 = inlined_call_operand.hbm [shape: f32[16,768], index: 2, kind: output, shape index: {}]
  %s3 = sld [smem:[#allocation0]]
  $region24: #{tpu_custom_call.1} parent=0
    _
  %s5 = ssub.s32 1, %s3
  %s6 = scalar_select 0, %s5, %s3
  %s8 = sshll.u32 %s0, 4
  %s9 = int_to_ptr.hbm [resolvable:$true] %s8
  %11 = dma.hbm_to_smem %s9, 16, [#allocation4], [#allocation3]
  %13 = dma.done [#allocation3], 16
  %14 = sfence
  $region1: #{tpu_custom_call.1} parent=0
    #allocation5 [shape = 'u8[49152]{0}', space=vmem, size = 0xc000, scoped, tag = 'output window, operand 0, single buffered']
    #allocation6 [shape = 's32[1]{0}', space=sflag, size = 0x4, scoped, tag = 'scoped memory for tpu_custom_call.1']
    %15 = vsyncpa [#allocation6], 0
    %s16 = smul.u32 0, 16
    %s17 = ssub.s32 16, %s16
    %p18 = scmp.lt.s32.totalorder %s17, 16
    %s19 = scalar_select %p18, %s17, 16
    // While loop
    $region2: #{tpu_custom_call.1} parent=1 // loop_pre_header
      _
    $region3: #{tpu_custom_call.1} parent=1 // loop_header
      %s21 = sphi 0, %s23
      %p22 = scmp.ge.s32.totalorder %s21, %s19
    $region4: #{tpu_custom_call.1} parent=1 // loop_header_branch
      %25 = sbr.rel (%p22) target = $region8
    $region5: #{tpu_custom_call.1} parent=1 // loop_body
      %s26 = sadd.s32 %s16, %s21
      %s27 = sld [smem:[#allocation4 + %s26]]
      %s28 = sshrl.u32 %s27, 3
      %s29 = sand.u32 %s27, 7
      %s30 = smul.u32 %s28, 48
      %s31 = sadd.s32 %s29, %s30
      %s32 = scalar_lea.hbm %s1, %s31
      %s33 = sshrl.u32 %s21, 3
      %s34 = sand.u32 %s21, 7
      %s35 = smul.u32 %s33, 48
      %s36 = sadd.s32 %s34, %s35
      %s37 = scalar_lea.vmem [#allocation5], %s36
      %s38 = sshll.u32 %s32, 4
      %s39 = int_to_ptr.hbm [resolvable:$true] %s38
      %s40 = sshll.u32 %s37, 4
      %s41 = int_to_ptr.vmem [resolvable:$true] %s40
      %45 = dma.hbm_to_vmem [thread:$0]  %s39, 96, %s41, [#allocation2], 128, 128, 1
    $region6: #{tpu_custom_call.1} parent=1 // loop_footer
      %s23 = sadd.s32 %s21, 1
    $region7: #{tpu_custom_call.1} parent=1 // loop_footer_branch
      %20 = sbr.rel target = $region3
    $region8: #{tpu_custom_call.1} parent=1 // loop_exit
      _
    // While loop
    $region9: #{tpu_custom_call.1} parent=1 // loop_pre_header
      _
    $region10: #{tpu_custom_call.1} parent=1 // loop_header
      %s47 = sphi 0, %s49
      %p48 = scmp.ge.s32.totalorder %s47, %s19
    $region11: #{tpu_custom_call.1} parent=1 // loop_header_branch
      %51 = sbr.rel (%p48) target = $region15
    $region12: #{tpu_custom_call.1} parent=1 // loop_body
      %s52 = smul.u32 1, 6
      %s53 = sshll.u32 %s52, 4
      %54 = dma.done [#allocation2], %s53
    $region13: #{tpu_custom_call.1} parent=1 // loop_footer
      %s49 = sadd.s32 %s47, 1
    $region14: #{tpu_custom_call.1} parent=1 // loop_footer_branch
      %46 = sbr.rel target = $region10
    $region15: #{tpu_custom_call.1} parent=1 // loop_exit
      _
    // Predicated region
    $region16: #{tpu_custom_call.1} parent=1 // pred_check
      _
    $region17: #{tpu_custom_call.1} parent=1 // pred_check_branch
      %56 = sbr.rel (0) target = $region19
    $region18: #{tpu_custom_call.1} parent=1 // pred_region
      %58 = vsyncadd [#allocation6], 0
      %s59 = sshll.u32 [#allocation5], 4
      %s60 = int_to_ptr.vmem [resolvable:$true] %s59
      %s61 = sshll.u32 %s2, 4
      %s62 = int_to_ptr.hbm [resolvable:$true] %s61
      %67 = dma.vmem_to_hbm [thread:$0]  %s60, 1536, %s62, [#allocation6], 768, 768, 48
    $region19: #{tpu_custom_call.1} parent=1 // pred_fallthru
      _
    // Predicated region
    $region20: #{tpu_custom_call.1} parent=1 // pred_check
      _
    $region21: #{tpu_custom_call.1} parent=1 // pred_check_branch
      %69 = sbr.rel (0) target = $region23
    $region22: #{tpu_custom_call.1} parent=1 // pred_region
      %71 = dma.done [#allocation6], 1536
    $region23: #{tpu_custom_call.1} parent=1 // pred_fallthru
      _
    %72 = vsyncpa [#allocation6], 1
  %73 = vsyncmov [#allocation2]
  %s74 = vpop.sfrf %73
  %p75 = scmp.eq.s32.totalorder %s74, 0
  %p76 = pneg %p75
  %78 = shalt.err (%p76)

</llo_original>
